<compile_context>
chip_gen: v5e
topology: v5e:2x2
jax: 0.10.0
libtpu: 0.0.40
codegen_flags: <defaults>
</compile_context>

<pallas_src>
import functools

import jax
import jax.numpy as jnp
import numpy as np
from jax.experimental import pallas as pl
from jax.experimental.pallas import tpu as pltpu


def ffm_fused_kernel(emb_ref, x_ref, o_ref, *, pairs, vocab, embed_dim):
    """Fused embedding gather (one-hot MXU matmul) + pairwise field products.

    emb_ref: (F, V, D)   table stack, VMEM-resident (same block every grid step).
    x_ref  : (Bt, F)     int32 feature indices of this batch tile.
    o_ref  : (Bt, P*D)   output tile; pair p occupies lanes [p*D, (p+1)*D).
    """
    x = x_ref[...]                                            # (Bt, F) int32
    bt, num_fields = x.shape
    dt = emb_ref.dtype

    # One selector matrix per field: onehot[g][b, v] = (v == x[b, g]).
    iota = jax.lax.broadcasted_iota(jnp.int32, (bt, vocab), 1)
    onehot = [(iota == x[:, g:g + 1]).astype(dt) for g in range(num_fields)]

    # Load each per-field table slab once.
    tables = [emb_ref[f] for f in range(num_fields)]          # each (V, D)

    for p, (i, j) in enumerate(pairs):
        # xs[j][:, i] = emb[j][x[:, i]]   and   xs[i][:, j] = emb[i][x[:, j]].
        # One-hot rows select exactly one table row -> exact gather; the MXU
        # accumulates in f32 (preferred_element_type).
        a = jnp.dot(onehot[i], tables[j], preferred_element_type=jnp.float32)
        b = jnp.dot(onehot[j], tables[i], preferred_element_type=jnp.float32)
        o_ref[:, p * embed_dim:(p + 1) * embed_dim] = (a * b).astype(o_ref.dtype)


def _vmem_capacity_bytes():
    """Per-core VMEM capacity; conservative default if the query is unavailable."""
    try:
        cap = getattr(pltpu.get_tpu_info(), "vmem_capacity_bytes", None)
        if cap:
            return int(cap)
    except Exception:
        pass
    return 64 * 1024 * 1024  # v7x per-TensorCore VMEM (smallest across v5e/v6e/v7x)


def _choose_batch_tile(batch, per_row_bytes, avail_bytes):
    """Largest batch tile (multiple of 8) that fits the VMEM budget.

    For large batches the tile is capped at ~ceil(B/2) so the 'parallel' batch
    grid has >= 2 programs and v7x megacore sharding actually engages.
    """
    bt = max(1, avail_bytes // per_row_bytes)
    if bt < batch:
        bt = max(8, (bt // 8) * 8)
    if batch >= 16:
        half = ((-(-batch // 2)) + 7) // 8 * 8    # ceil(B/2) rounded up to 8
        bt = min(bt, half)
    return int(min(bt, batch))


def _ffm_forward_xla_fallback(embeddings, x, pairs):
    """Huge-vocab fallback: let XLA fuse gather + multiply (no HBM slabs added)."""
    i_idx = jnp.asarray([p[0] for p in pairs], dtype=jnp.int32)
    j_idx = jnp.asarray([p[1] for p in pairs], dtype=jnp.int32)
    a = embeddings[j_idx[None, :], x[:, i_idx], :]    # (B, P, D) = xs[j][:, i]
    b = embeddings[i_idx[None, :], x[:, j_idx], :]    # (B, P, D) = xs[i][:, j]
    return a * b


def ffm_forward(embeddings, x):
    """embeddings: (F, V, D) stack of per-field tables (V = sum(field_dims));
    x: (B, F) integer feature indices.

    Returns (B, P, D) with P = F*(F-1)//2, pairs in (i < j) order — identical to
    the PyTorch module's forward.
    """
    embeddings = jnp.asarray(embeddings)
    x = jnp.asarray(x, dtype=jnp.int32)
    F, V, D = embeddings.shape
    B = x.shape[0]
    pairs = tuple((i, j) for i in range(F - 1) for j in range(i + 1, F))
    P = len(pairs)
    itemsize = jnp.dtype(embeddings.dtype).itemsize
    table_bytes = F * V * D * itemsize

    vmem_cap = _vmem_capacity_bytes()
    budget = min(vmem_cap // 2, 48 * 1024 * 1024)

    if table_bytes > min(budget // 4, 8 * 1024 * 1024) or V > 2048:
        # TODO(synk): large-vocab path — keep tables at memory_space=pl.ANY and
        # DMA-gather the needed rows per batch tile with make_async_copy double
        # buffering; until then XLA's fused gather+multiply is used directly.
        return _ffm_forward_xla_fallback(embeddings, x, pairs)

    # Per-batch-row VMEM footprint: double-buffered x/out blocks plus in-kernel
    # one-hot and pair temporaries.
    per_row = (2 * F * 4                      # x block (2 pipeline buffers)
               + 2 * P * D * itemsize         # out block (2 pipeline buffers)
               + F * V * itemsize             # one-hot selectors
               + 4 * D * itemsize)            # a / b / product temporaries
    avail = max(budget - 3 * table_bytes, per_row * 8)
    bt = _choose_batch_tile(B, per_row, avail)
    grid = (pl.cdiv(B, bt),)

    footprint = 3 * table_bytes + bt * per_row
    vmem_limit = int(min(max(footprint + (8 << 20), 16 << 20),
                         int(vmem_cap * 0.9)))

    kernel = functools.partial(ffm_fused_kernel, pairs=pairs, vocab=V, embed_dim=D)

    out2 = pl.pallas_call(
        kernel,
        out_shape=jax.ShapeDtypeStruct((B, P * D), embeddings.dtype),
        grid=grid,
        in_specs=[
            pl.BlockSpec((F, V, D), lambda b: (0, 0, 0)),   # tables: resident, DMA'd once
            pl.BlockSpec((bt, F), lambda b: (b, 0)),        # indices: per batch tile
        ],
        out_specs=pl.BlockSpec((bt, P * D), lambda b: (b, 0)),
        compiler_params=pltpu.CompilerParams(
            dimension_semantics=("parallel",),
            vmem_limit_bytes=vmem_limit),
        cost_estimate=pl.CostEstimate(
            flops=4 * B * P * V * D + B * P * D,
            transcendentals=0,
            bytes_accessed=B * P * D * itemsize + B * F * 4 + table_bytes),
    )(embeddings, x)

    return out2.reshape(B, P, D)


def ffm_reference(embeddings, x):
    """Pure-JAX reference mirroring the PyTorch forward."""
    F = embeddings.shape[0]
    xs = [embeddings[i][x] for i in range(F)]   # each (B, F, D)
    ix = [xs[j][:, i] * xs[i][:, j]
          for i in range(F - 1) for j in range(i + 1, F)]
    return jnp.stack(ix, axis=1)


if __name__ == "__main__":
    # Module hyper-parameters (small, deterministic).
    field_dims = np.array([3, 4, 5, 6])          # num_fields = 4
    num_fields = len(field_dims)
    input_dim = int(field_dims.sum())            # 18 (shared vocab across tables)
    embed_dim = 32
    batch = 2

    key = jax.random.PRNGKey(0)
    k_emb, k_x = jax.random.split(key)

    # Xavier-uniform init for each (input_dim, embed_dim) embedding table.
    limit = float(np.sqrt(6.0 / (input_dim + embed_dim)))
    embeddings = jax.random.uniform(
        k_emb, (num_fields, input_dim, embed_dim),
        minval=-limit, maxval=limit, dtype=jnp.float32)
    # Round the demo weights to bf16-representable f32 values so the exactness
    # check below is independent of the MXU's internal f32 pass count (the
    # one-hot gather contraction is then exact under any matmul precision).
    embeddings = embeddings.astype(jnp.bfloat16).astype(jnp.float32)

    # Integer feature indices, shape (batch, num_fields), values in [0, input_dim).
    x = jax.random.randint(k_x, (batch, num_fields), 0, input_dim, dtype=jnp.int32)

    out = jax.block_until_ready(ffm_forward(embeddings, x))
    ref = jax.block_until_ready(ffm_reference(embeddings, x))

    assert out.shape == (batch, num_fields * (num_fields - 1) // 2, embed_dim), out.shape
    np.testing.assert_allclose(np.asarray(out), np.asarray(ref), rtol=1e-6, atol=1e-6)

    print("KERNEL_OK")
</pallas_src>

<mosaic_0001>
module attributes {stable_mosaic.version = 11 : i64} {
  func.func @ffm_fused_kernel(%arg0: i32, %arg1: memref<4x18x32xf32, #tpu.memory_space<vmem>>, %arg2: memref<2x4xi32, #tpu.memory_space<vmem>>, %arg3: memref<2x192xf32, #tpu.memory_space<vmem>>) attributes {dimension_semantics = [#tpu.dimension_semantics<parallel>], iteration_bounds = array<i64: 1>, scalar_prefetch = 0 : i64, scratch_operands = 0 : i64, tpu.core_type = #tpu.core_type<tc>, window_params = [{pipeline_mode = #tpu.pipeline_mode<synchronous>, transform_indices = @transform_0, window_bounds = array<i64: 4, 18, 32>}, {transform_indices = @transform_1, window_bounds = array<i64: 2, 4>}, {transform_indices = @transform_2, window_bounds = array<i64: 2, 192>}]} {
    %c0 = arith.constant 0 : index
    %c0_0 = arith.constant 0 : index
    %0 = vector.load %arg2[%c0, %c0_0] : memref<2x4xi32, #tpu.memory_space<vmem>>, vector<2x4xi32>
    %1 = tpu.iota {dimensions = array<i32: 1>} : vector<2x18xi32>
    %2 = vector.extract_strided_slice %0 {offsets = [0, 0], sizes = [2, 1], strides = [1, 1]} : vector<2x4xi32> to vector<2x1xi32>
    %3 = vector.broadcast %2 : vector<2x1xi32> to vector<2x18xi32>
    %4 = arith.cmpi eq, %1, %3 : vector<2x18xi32>
    %5 = arith.extui %4 : vector<2x18xi1> to vector<2x18xi32>
    %6 = arith.sitofp %5 : vector<2x18xi32> to vector<2x18xf32>
    %7 = vector.extract_strided_slice %0 {offsets = [0, 1], sizes = [2, 1], strides = [1, 1]} : vector<2x4xi32> to vector<2x1xi32>
    %8 = vector.broadcast %7 : vector<2x1xi32> to vector<2x18xi32>
    %9 = arith.cmpi eq, %1, %8 : vector<2x18xi32>
    %10 = arith.extui %9 : vector<2x18xi1> to vector<2x18xi32>
    %11 = arith.sitofp %10 : vector<2x18xi32> to vector<2x18xf32>
    %12 = vector.extract_strided_slice %0 {offsets = [0, 2], sizes = [2, 1], strides = [1, 1]} : vector<2x4xi32> to vector<2x1xi32>
    %13 = vector.broadcast %12 : vector<2x1xi32> to vector<2x18xi32>
    %14 = arith.cmpi eq, %1, %13 : vector<2x18xi32>
    %15 = arith.extui %14 : vector<2x18xi1> to vector<2x18xi32>
    %16 = arith.sitofp %15 : vector<2x18xi32> to vector<2x18xf32>
    %17 = vector.extract_strided_slice %0 {offsets = [0, 3], sizes = [2, 1], strides = [1, 1]} : vector<2x4xi32> to vector<2x1xi32>
    %18 = vector.broadcast %17 : vector<2x1xi32> to vector<2x18xi32>
    %19 = arith.cmpi eq, %1, %18 : vector<2x18xi32>
    %20 = arith.extui %19 : vector<2x18xi1> to vector<2x18xi32>
    %21 = arith.sitofp %20 : vector<2x18xi32> to vector<2x18xf32>
    %c0_1 = arith.constant 0 : index
    %c0_2 = arith.constant 0 : index
    %c0_3 = arith.constant 0 : index
    %22 = vector.load %arg1[%c0_1, %c0_2, %c0_3] : memref<4x18x32xf32, #tpu.memory_space<vmem>>, vector<1x18x32xf32>
    %23 = vector.shape_cast %22 : vector<1x18x32xf32> to vector<18x32xf32>
    %c1 = arith.constant 1 : index
    %c0_4 = arith.constant 0 : index
    %c0_5 = arith.constant 0 : index
    %24 = vector.load %arg1[%c1, %c0_4, %c0_5] : memref<4x18x32xf32, #tpu.memory_space<vmem>>, vector<1x18x32xf32>
    %25 = vector.shape_cast %24 : vector<1x18x32xf32> to vector<18x32xf32>
    %c2 = arith.constant 2 : index
    %c0_6 = arith.constant 0 : index
    %c0_7 = arith.constant 0 : index
    %26 = vector.load %arg1[%c2, %c0_6, %c0_7] : memref<4x18x32xf32, #tpu.memory_space<vmem>>, vector<1x18x32xf32>
    %27 = vector.shape_cast %26 : vector<1x18x32xf32> to vector<18x32xf32>
    %c3 = arith.constant 3 : index
    %c0_8 = arith.constant 0 : index
    %c0_9 = arith.constant 0 : index
    %28 = vector.load %arg1[%c3, %c0_8, %c0_9] : memref<4x18x32xf32, #tpu.memory_space<vmem>>, vector<1x18x32xf32>
    %29 = vector.shape_cast %28 : vector<1x18x32xf32> to vector<18x32xf32>
    %cst = arith.constant dense<0.000000e+00> : vector<2x32xf32>
    %30 = tpu.matmul %6, %25, %cst {dimension_numbers = #tpu.dot_dimension_numbers<[1], [0], [0], [1], [0, 0, 1, 1], [], []>} : vector<2x18xf32>, vector<18x32xf32>, vector<2x32xf32> -> vector<2x32xf32>
    %cst_10 = arith.constant dense<0.000000e+00> : vector<2x32xf32>
    %31 = tpu.matmul %11, %23, %cst_10 {dimension_numbers = #tpu.dot_dimension_numbers<[1], [0], [0], [1], [0, 0, 1, 1], [], []>} : vector<2x18xf32>, vector<18x32xf32>, vector<2x32xf32> -> vector<2x32xf32>
    %32 = arith.mulf %30, %31 : vector<2x32xf32>
    %c0_11 = arith.constant 0 : index
    %c0_12 = arith.constant 0 : index
    %33 = vector.load %arg3[%c0_11, %c0_12] : memref<2x192xf32, #tpu.memory_space<vmem>>, vector<2x32xf32>
    tpu.vector_store %arg3[%c0_11, %c0_12], %32 {strides = array<i32>} : memref<2x192xf32, #tpu.memory_space<vmem>>, vector<2x32xf32>,
    %cst_13 = arith.constant dense<0.000000e+00> : vector<2x32xf32>
    %34 = tpu.matmul %6, %27, %cst_13 {dimension_numbers = #tpu.dot_dimension_numbers<[1], [0], [0], [1], [0, 0, 1, 1], [], []>} : vector<2x18xf32>, vector<18x32xf32>, vector<2x32xf32> -> vector<2x32xf32>
    %cst_14 = arith.constant dense<0.000000e+00> : vector<2x32xf32>
    %35 = tpu.matmul %16, %23, %cst_14 {dimension_numbers = #tpu.dot_dimension_numbers<[1], [0], [0], [1], [0, 0, 1, 1], [], []>} : vector<2x18xf32>, vector<18x32xf32>, vector<2x32xf32> -> vector<2x32xf32>
    %36 = arith.mulf %34, %35 : vector<2x32xf32>
    %c0_15 = arith.constant 0 : index
    %c32 = arith.constant 32 : index
    %37 = vector.load %arg3[%c0_15, %c32] : memref<2x192xf32, #tpu.memory_space<vmem>>, vector<2x32xf32>
    tpu.vector_store %arg3[%c0_15, %c32], %36 {strides = array<i32>} : memref<2x192xf32, #tpu.memory_space<vmem>>, vector<2x32xf32>,
    %cst_16 = arith.constant dense<0.000000e+00> : vector<2x32xf32>
    %38 = tpu.matmul %6, %29, %cst_16 {dimension_numbers = #tpu.dot_dimension_numbers<[1], [0], [0], [1], [0, 0, 1, 1], [], []>} : vector<2x18xf32>, vector<18x32xf32>, vector<2x32xf32> -> vector<2x32xf32>
    %cst_17 = arith.constant dense<0.000000e+00> : vector<2x32xf32>
    %39 = tpu.matmul %21, %23, %cst_17 {dimension_numbers = #tpu.dot_dimension_numbers<[1], [0], [0], [1], [0, 0, 1, 1], [], []>} : vector<2x18xf32>, vector<18x32xf32>, vector<2x32xf32> -> vector<2x32xf32>
    %40 = arith.mulf %38, %39 : vector<2x32xf32>
    %c0_18 = arith.constant 0 : index
    %c64 = arith.constant 64 : index
    %41 = vector.load %arg3[%c0_18, %c64] : memref<2x192xf32, #tpu.memory_space<vmem>>, vector<2x32xf32>
    tpu.vector_store %arg3[%c0_18, %c64], %40 {strides = array<i32>} : memref<2x192xf32, #tpu.memory_space<vmem>>, vector<2x32xf32>,
    %cst_19 = arith.constant dense<0.000000e+00> : vector<2x32xf32>
    %42 = tpu.matmul %11, %27, %cst_19 {dimension_numbers = #tpu.dot_dimension_numbers<[1], [0], [0], [1], [0, 0, 1, 1], [], []>} : vector<2x18xf32>, vector<18x32xf32>, vector<2x32xf32> -> vector<2x32xf32>
    %cst_20 = arith.constant dense<0.000000e+00> : vector<2x32xf32>
    %43 = tpu.matmul %16, %25, %cst_20 {dimension_numbers = #tpu.dot_dimension_numbers<[1], [0], [0], [1], [0, 0, 1, 1], [], []>} : vector<2x18xf32>, vector<18x32xf32>, vector<2x32xf32> -> vector<2x32xf32>
    %44 = arith.mulf %42, %43 : vector<2x32xf32>
    %c0_21 = arith.constant 0 : index
    %c96 = arith.constant 96 : index
    %45 = vector.load %arg3[%c0_21, %c96] : memref<2x192xf32, #tpu.memory_space<vmem>>, vector<2x32xf32>
    tpu.vector_store %arg3[%c0_21, %c96], %44 {strides = array<i32>} : memref<2x192xf32, #tpu.memory_space<vmem>>, vector<2x32xf32>,
    %cst_22 = arith.constant dense<0.000000e+00> : vector<2x32xf32>
    %46 = tpu.matmul %11, %29, %cst_22 {dimension_numbers = #tpu.dot_dimension_numbers<[1], [0], [0], [1], [0, 0, 1, 1], [], []>} : vector<2x18xf32>, vector<18x32xf32>, vector<2x32xf32> -> vector<2x32xf32>
    %cst_23 = arith.constant dense<0.000000e+00> : vector<2x32xf32>
    %47 = tpu.matmul %21, %25, %cst_23 {dimension_numbers = #tpu.dot_dimension_numbers<[1], [0], [0], [1], [0, 0, 1, 1], [], []>} : vector<2x18xf32>, vector<18x32xf32>, vector<2x32xf32> -> vector<2x32xf32>
    %48 = arith.mulf %46, %47 : vector<2x32xf32>
    %c0_24 = arith.constant 0 : index
    %c128 = arith.constant 128 : index
    %49 = vector.load %arg3[%c0_24, %c128] : memref<2x192xf32, #tpu.memory_space<vmem>>, vector<2x32xf32>
    tpu.vector_store %arg3[%c0_24, %c128], %48 {strides = array<i32>} : memref<2x192xf32, #tpu.memory_space<vmem>>, vector<2x32xf32>,
    %cst_25 = arith.constant dense<0.000000e+00> : vector<2x32xf32>
    %50 = tpu.matmul %16, %29, %cst_25 {dimension_numbers = #tpu.dot_dimension_numbers<[1], [0], [0], [1], [0, 0, 1, 1], [], []>} : vector<2x18xf32>, vector<18x32xf32>, vector<2x32xf32> -> vector<2x32xf32>
    %cst_26 = arith.constant dense<0.000000e+00> : vector<2x32xf32>
    %51 = tpu.matmul %21, %27, %cst_26 {dimension_numbers = #tpu.dot_dimension_numbers<[1], [0], [0], [1], [0, 0, 1, 1], [], []>} : vector<2x18xf32>, vector<18x32xf32>, vector<2x32xf32> -> vector<2x32xf32>
    %52 = arith.mulf %50, %51 : vector<2x32xf32>
    %c0_27 = arith.constant 0 : index
    %c160 = arith.constant 160 : index
    %53 = vector.load %arg3[%c0_27, %c160] : memref<2x192xf32, #tpu.memory_space<vmem>>, vector<2x32xf32>
    tpu.vector_store %arg3[%c0_27, %c160], %52 {strides = array<i32>} : memref<2x192xf32, #tpu.memory_space<vmem>>, vector<2x32xf32>,
    return
  }
  func.func @transform_0(%arg0: i32) -> (i32, i32, i32) {
    %c0_i32 = arith.constant 0 : i32
    %c0_i32_0 = arith.constant 0 : i32
    %c0_i32_1 = arith.constant 0 : i32
    %c0_i32_2 = arith.constant 0 : i32
    return %c0_i32, %c0_i32_0, %c0_i32_1 : i32, i32, i32
  }
  func.func @transform_1(%arg0: i32) -> (i32, i32) {
    %c0_i32 = arith.constant 0 : i32
    %c0_i32_0 = arith.constant 0 : i32
    return %arg0, %c0_i32 : i32, i32
  }
  func.func @transform_2(%arg0: i32) -> (i32, i32) {
    %c0_i32 = arith.constant 0 : i32
    %c0_i32_0 = arith.constant 0 : i32
    return %arg0, %c0_i32 : i32, i32
  }
}

</mosaic_0001>

<llo_original>
// kernel: tpu_custom_call.1
$region0: #{tpu_custom_call.1}
  #allocation0 [shape = 'u32[]', space=smem, size = 0x4, offset = 0x4, fixed_abs, tag = 'smem constant byte address 0x4 - core index']
  #allocation1 [shape = 'u32[72,128]{1,0:T(1,128)}', space=vmem, size = 0x9000, scoped, tag = 'internal scratch']
  %s0 = inlined_call_operand.vmem [shape: f32[4,18,32], index: 0, kind: input, shape index: {}]
  %s1 = inlined_call_operand.vmem [shape: s32[2,4], index: 1, kind: input, shape index: {}]
  %s2 = inlined_call_operand.hbm [shape: f32[2,192], index: 2, kind: output, shape index: {}]
  %s3 = sld [smem:[#allocation0]]
  $region18: #{tpu_custom_call.1} parent=0
    _
  %s5 = ssub.s32 1, %s3
  %s6 = scalar_select 0, %s5, %s3
  $region1: #{tpu_custom_call.1} parent=0
    #allocation2 [shape = 'u8[2048]{0}', space=vmem, size = 0x800, scoped, tag = 'output window, operand 0, single buffered']
    #allocation3 [shape = 's32[1]{0}', space=sflag, size = 0x4, scoped, tag = 'scoped memory for tpu_custom_call.1']
    %7 = vsyncpa [#allocation3], 0
    // Predicated region
    $region2: #{tpu_custom_call.1} parent=1 // pred_check
      _
    $region3: #{tpu_custom_call.1} parent=1 // pred_check_branch
      %9 = sbr.rel (0) target = $region5
    $region4: #{tpu_custom_call.1} parent=1 // pred_region
      _
    $region5: #{tpu_custom_call.1} parent=1 // pred_fallthru
      _
    // Predicated region
    $region6: #{tpu_custom_call.1} parent=1 // pred_check
      _
    $region7: #{tpu_custom_call.1} parent=1 // pred_check_branch
      %11 = sbr.rel (0) target = $region9
    $region8: #{tpu_custom_call.1} parent=1 // pred_region
      _
    $region9: #{tpu_custom_call.1} parent=1 // pred_fallthru
      _
    %v12 = vld [vmem:[%s1] sm:$0x3]
    %v13 = vlaneseq
    %v14 = vand.u32 %v13, 127
    %15 = vset.pattern.permute.xlu0 0
    %16 = vperm.xlu0 %15, %v12
    %v17 = vpop.permute.xlu0 %16
    %vm18 = vcmp.eq.s32.totalorder %v14, %v17
    %v19 = vsel %vm18, 1, 0
    %v20 = vcvt.s32.f32 %v19
    %21 = vset.pattern.permute.xlu0 1
    %22 = vperm.xlu0 %21, %v12
    %v23 = vpop.permute.xlu0 %22
    %vm24 = vcmp.eq.s32.totalorder %v14, %v23
    %v25 = vsel %vm24, 1, 0
    %v26 = vcvt.s32.f32 %v25
    %27 = vset.pattern.permute.xlu0 2
    %28 = vperm.xlu0 %27, %v12
    %v29 = vpop.permute.xlu0 %28
    %vm30 = vcmp.eq.s32.totalorder %v14, %v29
    %v31 = vsel %vm30, 1, 0
    %v32 = vcvt.s32.f32 %v31
    %33 = vset.pattern.permute.xlu0 3
    %34 = vperm.xlu0 %33, %v12
    %v35 = vpop.permute.xlu0 %34
    %vm36 = vcmp.eq.s32.totalorder %v14, %v35
    %v37 = vsel %vm36, 1, 0
    %v38 = vcvt.s32.f32 %v37
    %v39 = vld [vmem:[%s0] sm:$0xff]
    %v40 = vld [vmem:[%s0 + $0x8] sm:$0xff]
    %v41 = vld [vmem:[%s0 + $0x10] sm:$0x3]
    %s42 = scalar_lea.vmem %s0, 24
    %v43 = vld [vmem:[%s42] sm:$0xff]
    %v44 = vld [vmem:[%s42 + $0x8] sm:$0xff]
    %v45 = vld [vmem:[%s42 + $0x10] sm:$0x3]
    %s46 = scalar_lea.vmem %s0, 48
    %v47 = vld [vmem:[%s46] sm:$0xff]
    %v48 = vld [vmem:[%s46 + $0x8] sm:$0xff]
    %v49 = vld [vmem:[%s46 + $0x10] sm:$0x3]
    %s50 = scalar_lea.vmem %s0, 72
    %v51 = vld [vmem:[%s50] sm:$0xff]
    %v52 = vld [vmem:[%s50 + $0x8] sm:$0xff]
    %v53 = vld [vmem:[%s50 + $0x10] sm:$0x3]
    %vm54 = vcmask 146432
    %v56 = vsel %vm54, %v20, 0
    %vm58 = vcmask 1041408
    %v60 = vsel %vm58, %v45, 0
    %62 = vmatpush.msra.mxu0 0.0
    %63 = vmatpush.msra.mxu0 0.0
    %64 = vmatpush.msra.mxu0 0.0
    %65 = vmatpush.msra.mxu0 0.0
    %66 = vmatpush.msra.mxu0 0.0
    %67 = vmatpush.msra.mxu0 0.0
    %68 = vmatpush.msra.mxu0 0.0
    %69 = vmatpush.msra.mxu0 0.0
    %70 = vmatpush.msra.mxu0 0.0
    %71 = vmatpush.msra.mxu0 0.0
    %72 = vmatpush.msra.mxu0 0.0
    %73 = vmatpush.msra.mxu0 0.0
    %74 = vmatpush.msra.mxu0 0.0
    %75 = vmatpush.msra.mxu0 %v60
    %76 = vmatpush.msra.mxu0 %v44
    %77 = vmatpush.msra.mxu0 %v43
    %78 = vmatmul.f32.gmra.mxu0 %v56
    %v79 = vpop.f32.mrf.mxu0
    %v80 = vadd.f32 0.0, %v79
    %81 = vdwg.mxu0
    %v83 = vsel %vm54, %v26, 0
    %v86 = vsel %vm58, %v41, 0
    %88 = vmatpush.msra.mxu0 0.0
    %89 = vmatpush.msra.mxu0 0.0
    %90 = vmatpush.msra.mxu0 0.0
    %91 = vmatpush.msra.mxu0 0.0
    %92 = vmatpush.msra.mxu0 0.0
    %93 = vmatpush.msra.mxu0 0.0
    %94 = vmatpush.msra.mxu0 0.0
    %95 = vmatpush.msra.mxu0 0.0
    %96 = vmatpush.msra.mxu0 0.0
    %97 = vmatpush.msra.mxu0 0.0
    %98 = vmatpush.msra.mxu0 0.0
    %99 = vmatpush.msra.mxu0 0.0
    %100 = vmatpush.msra.mxu0 0.0
    %101 = vmatpush.msra.mxu0 %v86
    %102 = vmatpush.msra.mxu0 %v40
    %103 = vmatpush.msra.mxu0 %v39
    %104 = vmatmul.f32.gmra.mxu0 %v83
    %v105 = vpop.f32.mrf.mxu0
    %v106 = vadd.f32 0.0, %v105
    %107 = vdwg.mxu0
    %v108 = vmul.f32 %v80, %v106
    %vm109 = vcmask 254976
    %110 = vst.msk [vmem:[#allocation2] sm:$0x3] %vm109, %v108
    %v112 = vsel %vm58, %v49, 0
    %114 = vmatpush.msra.mxu0 0.0
    %115 = vmatpush.msra.mxu0 0.0
    %116 = vmatpush.msra.mxu0 0.0
    %117 = vmatpush.msra.mxu0 0.0
    %118 = vmatpush.msra.mxu0 0.0
    %119 = vmatpush.msra.mxu0 0.0
    %120 = vmatpush.msra.mxu0 0.0
    %121 = vmatpush.msra.mxu0 0.0
    %122 = vmatpush.msra.mxu0 0.0
    %123 = vmatpush.msra.mxu0 0.0
    %124 = vmatpush.msra.mxu0 0.0
    %125 = vmatpush.msra.mxu0 0.0
    %126 = vmatpush.msra.mxu0 0.0
    %127 = vmatpush.msra.mxu0 %v112
    %128 = vmatpush.msra.mxu0 %v48
    %129 = vmatpush.msra.mxu0 %v47
    %130 = vmatmul.f32.gmra.mxu0 %v56
    %v131 = vpop.f32.mrf.mxu0
    %v132 = vadd.f32 0.0, %v131
    %133 = vdwg.mxu0
    %v135 = vsel %vm54, %v32, 0
    %137 = vmatpush.msra.mxu0 0.0
    %138 = vmatpush.msra.mxu0 0.0
    %139 = vmatpush.msra.mxu0 0.0
    %140 = vmatpush.msra.mxu0 0.0
    %141 = vmatpush.msra.mxu0 0.0
    %142 = vmatpush.msra.mxu0 0.0
    %143 = vmatpush.msra.mxu0 0.0
    %144 = vmatpush.msra.mxu0 0.0
    %145 = vmatpush.msra.mxu0 0.0
    %146 = vmatpush.msra.mxu0 0.0
    %147 = vmatpush.msra.mxu0 0.0
    %148 = vmatpush.msra.mxu0 0.0
    %149 = vmatpush.msra.mxu0 0.0
    %150 = vmatpush.msra.mxu0 %v86
    %151 = vmatpush.msra.mxu0 %v40
    %152 = vmatpush.msra.mxu0 %v39
    %153 = vmatmul.f32.gmra.mxu0 %v135
    %v154 = vpop.f32.mrf.mxu0
    %v155 = vadd.f32 0.0, %v154
    %156 = vdwg.mxu0
    %v157 = vmul.f32 %v132, %v155
    %159 = vrot.lane.b32.xlu0 %v157, 32
    %v160 = vpop.permute.xlu0 %159
    %vm162 = vcmask 517376
    %163 = vst.msk [vmem:[#allocation2] sm:$0x3] %vm162, %v160
    %v165 = vsel %vm58, %v53, 0
    %167 = vmatpush.msra.mxu0 0.0
    %168 = vmatpush.msra.mxu0 0.0
    %169 = vmatpush.msra.mxu0 0.0
    %170 = vmatpush.msra.mxu0 0.0
    %171 = vmatpush.msra.mxu0 0.0
    %172 = vmatpush.msra.mxu0 0.0
    %173 = vmatpush.msra.mxu0 0.0
    %174 = vmatpush.msra.mxu0 0.0
    %175 = vmatpush.msra.mxu0 0.0
    %176 = vmatpush.msra.mxu0 0.0
    %177 = vmatpush.msra.mxu0 0.0
    %178 = vmatpush.msra.mxu0 0.0
    %179 = vmatpush.msra.mxu0 0.0
    %180 = vmatpush.msra.mxu0 %v165
    %181 = vmatpush.msra.mxu0 %v52
    %182 = vmatpush.msra.mxu0 %v51
    %183 = vmatmul.f32.gmra.mxu0 %v56
    %v184 = vpop.f32.mrf.mxu0
    %v185 = vadd.f32 0.0, %v184
    %186 = vdwg.mxu0
    %v188 = vsel %vm54, %v38, 0
    %190 = vmatpush.msra.mxu0 0.0
    %191 = vmatpush.msra.mxu0 0.0
    %192 = vmatpush.msra.mxu0 0.0
    %193 = vmatpush.msra.mxu0 0.0
    %194 = vmatpush.msra.mxu0 0.0
    %195 = vmatpush.msra.mxu0 0.0
    %196 = vmatpush.msra.mxu0 0.0
    %197 = vmatpush.msra.mxu0 0.0
    %198 = vmatpush.msra.mxu0 0.0
    %199 = vmatpush.msra.mxu0 0.0
    %200 = vmatpush.msra.mxu0 0.0
    %201 = vmatpush.msra.mxu0 0.0
    %202 = vmatpush.msra.mxu0 0.0
    %203 = vmatpush.msra.mxu0 %v86
    %204 = vmatpush.msra.mxu0 %v40
    %205 = vmatpush.msra.mxu0 %v39
    %206 = vmatmul.f32.gmra.mxu0 %v188
    %v207 = vpop.f32.mrf.mxu0
    %v208 = vadd.f32 0.0, %v207
    %209 = vdwg.mxu0
    %v210 = vmul.f32 %v185, %v208
    %212 = vrot.lane.b32.xlu0 %v210, 64
    %v213 = vpop.permute.xlu0 %212
    %vm215 = vcmask 779776
    %216 = vst.msk [vmem:[#allocation2] sm:$0x3] %vm215, %v213
    %217 = vmatpush.msra.mxu0 0.0
    %218 = vmatpush.msra.mxu0 0.0
    %219 = vmatpush.msra.mxu0 0.0
    %220 = vmatpush.msra.mxu0 0.0
    %221 = vmatpush.msra.mxu0 0.0
    %222 = vmatpush.msra.mxu0 0.0
    %223 = vmatpush.msra.mxu0 0.0
    %224 = vmatpush.msra.mxu0 0.0
    %225 = vmatpush.msra.mxu0 0.0
    %226 = vmatpush.msra.mxu0 0.0
    %227 = vmatpush.msra.mxu0 0.0
    %228 = vmatpush.msra.mxu0 0.0
    %229 = vmatpush.msra.mxu0 0.0
    %230 = vmatpush.msra.mxu0 %v112
    %231 = vmatpush.msra.mxu0 %v48
    %232 = vmatpush.msra.mxu0 %v47
    %233 = vmatmul.f32.gmra.mxu0 %v83
    %v234 = vpop.f32.mrf.mxu0
    %v235 = vadd.f32 0.0, %v234
    %236 = vdwg.mxu0
    %237 = vmatpush.msra.mxu0 0.0
    %238 = vmatpush.msra.mxu0 0.0
    %239 = vmatpush.msra.mxu0 0.0
    %240 = vmatpush.msra.mxu0 0.0
    %241 = vmatpush.msra.mxu0 0.0
    %242 = vmatpush.msra.mxu0 0.0
    %243 = vmatpush.msra.mxu0 0.0
    %244 = vmatpush.msra.mxu0 0.0
    %245 = vmatpush.msra.mxu0 0.0
    %246 = vmatpush.msra.mxu0 0.0
    %247 = vmatpush.msra.mxu0 0.0
    %248 = vmatpush.msra.mxu0 0.0
    %249 = vmatpush.msra.mxu0 0.0
    %250 = vmatpush.msra.mxu0 %v60
    %251 = vmatpush.msra.mxu0 %v44
    %252 = vmatpush.msra.mxu0 %v43
    %253 = vmatmul.f32.gmra.mxu0 %v135
    %v254 = vpop.f32.mrf.mxu0
    %v255 = vadd.f32 0.0, %v254
    %256 = vdwg.mxu0
    %v257 = vmul.f32 %v235, %v255
    %259 = vrot.lane.b32.xlu0 %v257, 96
    %v260 = vpop.permute.xlu0 %259
    %vm262 = vcmask 1042176
    %263 = vst.msk [vmem:[#allocation2] sm:$0x3] %vm262, %v260
    %264 = vmatpush.msra.mxu0 0.0
    %265 = vmatpush.msra.mxu0 0.0
    %266 = vmatpush.msra.mxu0 0.0
    %267 = vmatpush.msra.mxu0 0.0
    %268 = vmatpush.msra.mxu0 0.0
    %269 = vmatpush.msra.mxu0 0.0
    %270 = vmatpush.msra.mxu0 0.0
    %271 = vmatpush.msra.mxu0 0.0
    %272 = vmatpush.msra.mxu0 0.0
    %273 = vmatpush.msra.mxu0 0.0
    %274 = vmatpush.msra.mxu0 0.0
    %275 = vmatpush.msra.mxu0 0.0
    %276 = vmatpush.msra.mxu0 0.0
    %277 = vmatpush.msra.mxu0 %v165
    %278 = vmatpush.msra.mxu0 %v52
    %279 = vmatpush.msra.mxu0 %v51
    %280 = vmatmul.f32.gmra.mxu0 %v83
    %v281 = vpop.f32.mrf.mxu0
    %v282 = vadd.f32 0.0, %v281
    %283 = vdwg.mxu0
    %284 = vmatpush.msra.mxu0 0.0
    %285 = vmatpush.msra.mxu0 0.0
    %286 = vmatpush.msra.mxu0 0.0
    %287 = vmatpush.msra.mxu0 0.0
    %288 = vmatpush.msra.mxu0 0.0
    %289 = vmatpush.msra.mxu0 0.0
    %290 = vmatpush.msra.mxu0 0.0
    %291 = vmatpush.msra.mxu0 0.0
    %292 = vmatpush.msra.mxu0 0.0
    %293 = vmatpush.msra.mxu0 0.0
    %294 = vmatpush.msra.mxu0 0.0
    %295 = vmatpush.msra.mxu0 0.0
    %296 = vmatpush.msra.mxu0 0.0
    %297 = vmatpush.msra.mxu0 %v60
    %298 = vmatpush.msra.mxu0 %v44
    %299 = vmatpush.msra.mxu0 %v43
    %300 = vmatmul.f32.gmra.mxu0 %v188
    %v301 = vpop.f32.mrf.mxu0
    %v302 = vadd.f32 0.0, %v301
    %303 = vdwg.mxu0
    %v304 = vmul.f32 %v282, %v302
    %305 = vst.msk [vmem:[#allocation2 + $0x2] sm:$0x3] %vm109, %v304
    %306 = vmatpush.msra.mxu0 0.0
    %307 = vmatpush.msra.mxu0 0.0
    %308 = vmatpush.msra.mxu0 0.0
    %309 = vmatpush.msra.mxu0 0.0
    %310 = vmatpush.msra.mxu0 0.0
    %311 = vmatpush.msra.mxu0 0.0
    %312 = vmatpush.msra.mxu0 0.0
    %313 = vmatpush.msra.mxu0 0.0
    %314 = vmatpush.msra.mxu0 0.0
    %315 = vmatpush.msra.mxu0 0.0
    %316 = vmatpush.msra.mxu0 0.0
    %317 = vmatpush.msra.mxu0 0.0
    %318 = vmatpush.msra.mxu0 0.0
    %319 = vmatpush.msra.mxu0 %v165
    %320 = vmatpush.msra.mxu0 %v52
    %321 = vmatpush.msra.mxu0 %v51
    %322 = vmatmul.f32.gmra.mxu0 %v135
    %v323 = vpop.f32.mrf.mxu0
    %v324 = vadd.f32 0.0, %v323
    %325 = vdwg.mxu0
    %326 = vmatpush.msra.mxu0 0.0
    %327 = vmatpush.msra.mxu0 0.0
    %328 = vmatpush.msra.mxu0 0.0
    %329 = vmatpush.msra.mxu0 0.0
    %330 = vmatpush.msra.mxu0 0.0
    %331 = vmatpush.msra.mxu0 0.0
    %332 = vmatpush.msra.mxu0 0.0
    %333 = vmatpush.msra.mxu0 0.0
    %334 = vmatpush.msra.mxu0 0.0
    %335 = vmatpush.msra.mxu0 0.0
    %336 = vmatpush.msra.mxu0 0.0
    %337 = vmatpush.msra.mxu0 0.0
    %338 = vmatpush.msra.mxu0 0.0
    %339 = vmatpush.msra.mxu0 %v112
    %340 = vmatpush.msra.mxu0 %v48
    %341 = vmatpush.msra.mxu0 %v47
    %342 = vmatmul.f32.gmra.mxu0 %v188
    %v343 = vpop.f32.mrf.mxu0
    %v344 = vadd.f32 0.0, %v343
    %345 = vdwg.mxu0
    %v346 = vmul.f32 %v324, %v344
    %348 = vrot.lane.b32.xlu0 %v346, 32
    %v349 = vpop.permute.xlu0 %348
    %351 = vst.msk [vmem:[#allocation2 + $0x2] sm:$0x3] %vm162, %v349
    // Predicated region
    $region10: #{tpu_custom_call.1} parent=1 // pred_check
      _
    $region11: #{tpu_custom_call.1} parent=1 // pred_check_branch
      %353 = sbr.rel (0) target = $region13
    $region12: #{tpu_custom_call.1} parent=1 // pred_region
      %355 = vsyncadd [#allocation3], 0
      %s357 = sshll.u32 [#allocation2], 4
      %s358 = int_to_ptr.vmem [resolvable:$true] %s357
      %s359 = sshll.u32 %s2, 4
      %s360 = int_to_ptr.hbm [resolvable:$true] %s359
      %362 = dma.vmem_to_hbm [thread:$0]  %s358, 64, %s360, [#allocation3]
    $region13: #{tpu_custom_call.1} parent=1 // pred_fallthru
      _
    // Predicated region
    $region14: #{tpu_custom_call.1} parent=1 // pred_check
      _
    $region15: #{tpu_custom_call.1} parent=1 // pred_check_branch
      %364 = sbr.rel (0) target = $region17
    $region16: #{tpu_custom_call.1} parent=1 // pred_region
      %366 = dma.done [#allocation3], 64
    $region17: #{tpu_custom_call.1} parent=1 // pred_fallthru
      _
    %367 = vsyncpa [#allocation3], 1

</llo_original>
